<compile_context>
chip_gen: v7x
topology: tpu7x:2x2x1
jax: 0.10.0
libtpu: 0.0.40
codegen_flags: <defaults>
</compile_context>

<pallas_src>
import functools

import numpy as np
import jax
import jax.numpy as jnp
from jax.experimental import pallas as pl
from jax.experimental.pallas import tpu as pltpu  # noqa: F401

OPENAI_DATASET_MEAN = (0.48145466, 0.4578275, 0.40821073)
OPENAI_DATASET_STD = (0.26862954, 0.26130258, 0.27577711)


# ---------------- trace-time (host) bicubic resize weight matrices ----------------

def _bicubic_kernel(x, a=-0.5):
    x = np.abs(x)
    return np.where(
        x < 1.0, ((a + 2.0) * x - (a + 3.0)) * x * x + 1.0,
        np.where(x < 2.0, (((x - 5.0) * x + 8.0) * x - 4.0) * a, 0.0))


def _resize_matrix(in_size, out_size):
    """PIL-style antialiased bicubic resampling weights, shape [out_size, in_size]."""
    support = 2.0
    scale = in_size / out_size
    filterscale = max(scale, 1.0)
    supp = support * filterscale
    mat = np.zeros((out_size, in_size), np.float64)
    for i in range(out_size):
        center = (i + 0.5) * scale
        xmin = max(int(center - supp + 0.5), 0)
        xmax = min(int(center + supp + 0.5), in_size)
        xs = np.arange(xmin, xmax, dtype=np.float64)
        w = _bicubic_kernel((xs + 0.5 - center) / filterscale)
        s = w.sum()
        if s != 0.0:
            w = w / s
        mat[i, xmin:xmax] = w
    return mat.astype(np.float32)


def _resize_crop_matrices(h, w, size):
    """torchvision Resize(int) shorter-edge target + CenterCrop(size),
    with the crop folded into the resize matrices."""
    if h > w:
        new_w = size
        new_h = max(int(size * h / w), size)
    else:
        new_h = size
        new_w = max(int(size * w / h), size)
    wy = _resize_matrix(h, new_h)                     # [new_h, h]
    wx = _resize_matrix(w, new_w)                     # [new_w, w]
    top = int(round((new_h - size) / 2.0))
    left = int(round((new_w - size) / 2.0))
    wy_c = np.ascontiguousarray(wy[top:top + size])   # [size, h]
    wxt_c = np.ascontiguousarray(wx[left:left + size].T)  # [w, size]
    return jnp.asarray(wy_c), jnp.asarray(wxt_c)


# ---------------- fused Pallas kernel ----------------

def _preprocess_kernel(x_ref, wy_ref, wxt_ref, o_ref, *, scales, biases):
    """x_ref: [N, H, W] f32 image planes (N = batch*channels, channel-major per image)
       wy_ref: [S, H] row-resize(+crop) matrix; wxt_ref: [W, S] col-resize(+crop)^T
       o_ref: [N, S, S] output planes; scales/biases: baked per-plane constants."""
    wy = wy_ref[...]
    wxt = wxt_ref[...]
    n_planes = x_ref.shape[0]
    for n in range(n_planes):  # static unroll — N is tiny, everything stays in VMEM
        t = jnp.dot(wy, x_ref[n], preferred_element_type=jnp.float32)   # [S, W]
        r = jnp.dot(t, wxt, preferred_element_type=jnp.float32)         # [S, S]
        o_ref[n] = (r * scales[n] + biases[n]).astype(o_ref.dtype)


def _full_spec(shape):
    nd = len(shape)
    return pl.BlockSpec(shape, lambda: (0,) * nd)


def image_preprocess(image, *, image_size=16,
                     mean=OPENAI_DATASET_MEAN, std=OPENAI_DATASET_STD,
                     out_dtype=jnp.float32):
    """JAX/Pallas equivalent of ImagePreprozessorWrapper.forward (batched uint8 HWC in,
    normalized float32 NCHW out)."""
    if image.ndim == 3:                       # single image -> stacked like the module
        image = image[None]
    if isinstance(image_size, (list, tuple)) and image_size[0] == image_size[1]:
        image_size = image_size[0]
    if not isinstance(mean, (list, tuple)):
        mean = (mean,) * 3
    if not isinstance(std, (list, tuple)):
        std = (std,) * 3

    b, h, w, c = image.shape
    s = int(image_size)
    wy, wxt = _resize_crop_matrices(h, w, s)

    # glue: uint8 -> f32, HWC -> CHW planes (tiny, layout plumbing only)
    x = image.astype(jnp.uint8).astype(jnp.float32)
    x = jnp.transpose(x, (0, 3, 1, 2)).reshape(b * c, h, w)

    # ToTensor (/255) + Normalize folded into baked per-plane constants
    scales = tuple(float(1.0 / (255.0 * std[i % c])) for i in range(b * c))
    biases = tuple(float(-mean[i % c] / std[i % c]) for i in range(b * c))

    kernel = functools.partial(_preprocess_kernel, scales=scales, biases=biases)
    out = pl.pallas_call(
        kernel,
        out_shape=jax.ShapeDtypeStruct((b * c, s, s), out_dtype),
        in_specs=[_full_spec((b * c, h, w)),
                  _full_spec((s, h)),
                  _full_spec((w, s))],
        out_specs=_full_spec((b * c, s, s)),
    )(x, wy, wxt)

    return out.reshape(b, c, s, s)


if __name__ == "__main__":
    key = jax.random.PRNGKey(0)
    B, H, W, C = 2, 40, 32, 3          # rectangular input so resize+crop both fire
    IMAGE_SIZE = 16

    image = jax.random.randint(key, (B, H, W, C), 0, 256, dtype=jnp.int32).astype(jnp.uint8)

    fn = jax.jit(lambda img: image_preprocess(img, image_size=IMAGE_SIZE))
    out = jax.block_until_ready(fn(image))

    assert out.shape == (B, C, IMAGE_SIZE, IMAGE_SIZE), out.shape
    assert out.dtype == jnp.float32, out.dtype
    assert bool(jnp.all(jnp.isfinite(out)))

    # Non-circular end-to-end check: every resize row sums to 1, so a constant
    # image of value v must map to (v/255 - mean_c)/std_c at every output pixel.
    const_img = jnp.full((1, H, W, C), 128, jnp.uint8)
    got = jax.block_until_ready(fn(const_img))
    want = (128.0 / 255.0 - jnp.asarray(OPENAI_DATASET_MEAN)) / jnp.asarray(OPENAI_DATASET_STD)
    err = float(jnp.max(jnp.abs(got - want[None, :, None, None])))
    assert err < 2e-2, err

    print("KERNEL_OK")
</pallas_src>

<mosaic_0001>
module attributes {stable_mosaic.version = 11 : i64} {
  func.func @_preprocess_kernel(%arg0: memref<6x40x32xf32, #tpu.memory_space<vmem>>, %arg1: memref<16x40xf32, #tpu.memory_space<vmem>>, %arg2: memref<32x16xf32, #tpu.memory_space<vmem>>, %arg3: memref<6x16x16xf32, #tpu.memory_space<vmem>>) attributes {dimension_semantics = [], scalar_prefetch = 0 : i64, scratch_operands = 0 : i64, tpu.core_type = #tpu.core_type<tc>} {
    %c0 = arith.constant 0 : index
    %c0_0 = arith.constant 0 : index
    %0 = vector.load %arg1[%c0, %c0_0] : memref<16x40xf32, #tpu.memory_space<vmem>>, vector<16x40xf32>
    %c0_1 = arith.constant 0 : index
    %c0_2 = arith.constant 0 : index
    %1 = vector.load %arg2[%c0_1, %c0_2] : memref<32x16xf32, #tpu.memory_space<vmem>>, vector<32x16xf32>
    %c0_3 = arith.constant 0 : index
    %c0_4 = arith.constant 0 : index
    %c0_5 = arith.constant 0 : index
    %2 = vector.load %arg0[%c0_3, %c0_4, %c0_5] : memref<6x40x32xf32, #tpu.memory_space<vmem>>, vector<1x40x32xf32>
    %3 = vector.shape_cast %2 : vector<1x40x32xf32> to vector<40x32xf32>
    %cst = arith.constant dense<0.000000e+00> : vector<16x32xf32>
    %4 = tpu.matmul %0, %3, %cst {dimension_numbers = #tpu.dot_dimension_numbers<[1], [0], [0], [1], [0, 0, 1, 1], [], []>} : vector<16x40xf32>, vector<40x32xf32>, vector<16x32xf32> -> vector<16x32xf32>
    %cst_6 = arith.constant dense<0.000000e+00> : vector<16x16xf32>
    %5 = tpu.matmul %4, %1, %cst_6 {dimension_numbers = #tpu.dot_dimension_numbers<[1], [0], [0], [1], [0, 0, 1, 1], [], []>} : vector<16x32xf32>, vector<32x16xf32>, vector<16x16xf32> -> vector<16x16xf32>
    %cst_7 = arith.constant 0.0145984264 : f32
    %6 = vector.broadcast %cst_7 : f32 to vector<16x16xf32>
    %7 = arith.mulf %5, %6 : vector<16x16xf32>
    %cst_8 = arith.constant -1.79226255 : f32
    %8 = vector.broadcast %cst_8 : f32 to vector<16x16xf32>
    %9 = arith.addf %7, %8 : vector<16x16xf32>
    %c0_9 = arith.constant 0 : index
    %c0_10 = arith.constant 0 : index
    %c0_11 = arith.constant 0 : index
    %10 = vector.load %arg3[%c0_9, %c0_10, %c0_11] : memref<6x16x16xf32, #tpu.memory_space<vmem>>, vector<1x16x16xf32>
    %11 = vector.shape_cast %10 : vector<1x16x16xf32> to vector<16x16xf32>
    %12 = vector.shape_cast %9 : vector<16x16xf32> to vector<1x16x16xf32>
    tpu.vector_store %arg3[%c0_9, %c0_10, %c0_11], %12 {strides = array<i32>} : memref<6x16x16xf32, #tpu.memory_space<vmem>>, vector<1x16x16xf32>,
    %c1 = arith.constant 1 : index
    %c0_12 = arith.constant 0 : index
    %c0_13 = arith.constant 0 : index
    %13 = vector.load %arg0[%c1, %c0_12, %c0_13] : memref<6x40x32xf32, #tpu.memory_space<vmem>>, vector<1x40x32xf32>
    %14 = vector.shape_cast %13 : vector<1x40x32xf32> to vector<40x32xf32>
    %cst_14 = arith.constant dense<0.000000e+00> : vector<16x32xf32>
    %15 = tpu.matmul %0, %14, %cst_14 {dimension_numbers = #tpu.dot_dimension_numbers<[1], [0], [0], [1], [0, 0, 1, 1], [], []>} : vector<16x40xf32>, vector<40x32xf32>, vector<16x32xf32> -> vector<16x32xf32>
    %cst_15 = arith.constant dense<0.000000e+00> : vector<16x16xf32>
    %16 = tpu.matmul %15, %1, %cst_15 {dimension_numbers = #tpu.dot_dimension_numbers<[1], [0], [0], [1], [0, 0, 1, 1], [], []>} : vector<16x32xf32>, vector<32x16xf32>, vector<16x16xf32> -> vector<16x16xf32>
    %cst_16 = arith.constant 0.0150077688 : f32
    %17 = vector.broadcast %cst_16 : f32 to vector<16x16xf32>
    %18 = arith.mulf %16, %17 : vector<16x16xf32>
    %cst_17 = arith.constant -1.75209713 : f32
    %19 = vector.broadcast %cst_17 : f32 to vector<16x16xf32>
    %20 = arith.addf %18, %19 : vector<16x16xf32>
    %c1_18 = arith.constant 1 : index
    %c0_19 = arith.constant 0 : index
    %c0_20 = arith.constant 0 : index
    %21 = vector.load %arg3[%c1_18, %c0_19, %c0_20] : memref<6x16x16xf32, #tpu.memory_space<vmem>>, vector<1x16x16xf32>
    %22 = vector.shape_cast %21 : vector<1x16x16xf32> to vector<16x16xf32>
    %23 = vector.shape_cast %20 : vector<16x16xf32> to vector<1x16x16xf32>
    tpu.vector_store %arg3[%c1_18, %c0_19, %c0_20], %23 {strides = array<i32>} : memref<6x16x16xf32, #tpu.memory_space<vmem>>, vector<1x16x16xf32>,
    %c2 = arith.constant 2 : index
    %c0_21 = arith.constant 0 : index
    %c0_22 = arith.constant 0 : index
    %24 = vector.load %arg0[%c2, %c0_21, %c0_22] : memref<6x40x32xf32, #tpu.memory_space<vmem>>, vector<1x40x32xf32>
    %25 = vector.shape_cast %24 : vector<1x40x32xf32> to vector<40x32xf32>
    %cst_23 = arith.constant dense<0.000000e+00> : vector<16x32xf32>
    %26 = tpu.matmul %0, %25, %cst_23 {dimension_numbers = #tpu.dot_dimension_numbers<[1], [0], [0], [1], [0, 0, 1, 1], [], []>} : vector<16x40xf32>, vector<40x32xf32>, vector<16x32xf32> -> vector<16x32xf32>
    %cst_24 = arith.constant dense<0.000000e+00> : vector<16x16xf32>
    %27 = tpu.matmul %26, %1, %cst_24 {dimension_numbers = #tpu.dot_dimension_numbers<[1], [0], [0], [1], [0, 0, 1, 1], [], []>} : vector<16x32xf32>, vector<32x16xf32>, vector<16x16xf32> -> vector<16x16xf32>
    %cst_25 = arith.constant 0.0142200654 : f32
    %28 = vector.broadcast %cst_25 : f32 to vector<16x16xf32>
    %29 = arith.mulf %27, %28 : vector<16x16xf32>
    %cst_26 = arith.constant -1.48021972 : f32
    %30 = vector.broadcast %cst_26 : f32 to vector<16x16xf32>
    %31 = arith.addf %29, %30 : vector<16x16xf32>
    %c2_27 = arith.constant 2 : index
    %c0_28 = arith.constant 0 : index
    %c0_29 = arith.constant 0 : index
    %32 = vector.load %arg3[%c2_27, %c0_28, %c0_29] : memref<6x16x16xf32, #tpu.memory_space<vmem>>, vector<1x16x16xf32>
    %33 = vector.shape_cast %32 : vector<1x16x16xf32> to vector<16x16xf32>
    %34 = vector.shape_cast %31 : vector<16x16xf32> to vector<1x16x16xf32>
    tpu.vector_store %arg3[%c2_27, %c0_28, %c0_29], %34 {strides = array<i32>} : memref<6x16x16xf32, #tpu.memory_space<vmem>>, vector<1x16x16xf32>,
    %c3 = arith.constant 3 : index
    %c0_30 = arith.constant 0 : index
    %c0_31 = arith.constant 0 : index
    %35 = vector.load %arg0[%c3, %c0_30, %c0_31] : memref<6x40x32xf32, #tpu.memory_space<vmem>>, vector<1x40x32xf32>
    %36 = vector.shape_cast %35 : vector<1x40x32xf32> to vector<40x32xf32>
    %cst_32 = arith.constant dense<0.000000e+00> : vector<16x32xf32>
    %37 = tpu.matmul %0, %36, %cst_32 {dimension_numbers = #tpu.dot_dimension_numbers<[1], [0], [0], [1], [0, 0, 1, 1], [], []>} : vector<16x40xf32>, vector<40x32xf32>, vector<16x32xf32> -> vector<16x32xf32>
    %cst_33 = arith.constant dense<0.000000e+00> : vector<16x16xf32>
    %38 = tpu.matmul %37, %1, %cst_33 {dimension_numbers = #tpu.dot_dimension_numbers<[1], [0], [0], [1], [0, 0, 1, 1], [], []>} : vector<16x32xf32>, vector<32x16xf32>, vector<16x16xf32> -> vector<16x16xf32>
    %cst_34 = arith.constant 0.0145984264 : f32
    %39 = vector.broadcast %cst_34 : f32 to vector<16x16xf32>
    %40 = arith.mulf %38, %39 : vector<16x16xf32>
    %cst_35 = arith.constant -1.79226255 : f32
    %41 = vector.broadcast %cst_35 : f32 to vector<16x16xf32>
    %42 = arith.addf %40, %41 : vector<16x16xf32>
    %c3_36 = arith.constant 3 : index
    %c0_37 = arith.constant 0 : index
    %c0_38 = arith.constant 0 : index
    %43 = vector.load %arg3[%c3_36, %c0_37, %c0_38] : memref<6x16x16xf32, #tpu.memory_space<vmem>>, vector<1x16x16xf32>
    %44 = vector.shape_cast %43 : vector<1x16x16xf32> to vector<16x16xf32>
    %45 = vector.shape_cast %42 : vector<16x16xf32> to vector<1x16x16xf32>
    tpu.vector_store %arg3[%c3_36, %c0_37, %c0_38], %45 {strides = array<i32>} : memref<6x16x16xf32, #tpu.memory_space<vmem>>, vector<1x16x16xf32>,
    %c4 = arith.constant 4 : index
    %c0_39 = arith.constant 0 : index
    %c0_40 = arith.constant 0 : index
    %46 = vector.load %arg0[%c4, %c0_39, %c0_40] : memref<6x40x32xf32, #tpu.memory_space<vmem>>, vector<1x40x32xf32>
    %47 = vector.shape_cast %46 : vector<1x40x32xf32> to vector<40x32xf32>
    %cst_41 = arith.constant dense<0.000000e+00> : vector<16x32xf32>
    %48 = tpu.matmul %0, %47, %cst_41 {dimension_numbers = #tpu.dot_dimension_numbers<[1], [0], [0], [1], [0, 0, 1, 1], [], []>} : vector<16x40xf32>, vector<40x32xf32>, vector<16x32xf32> -> vector<16x32xf32>
    %cst_42 = arith.constant dense<0.000000e+00> : vector<16x16xf32>
    %49 = tpu.matmul %48, %1, %cst_42 {dimension_numbers = #tpu.dot_dimension_numbers<[1], [0], [0], [1], [0, 0, 1, 1], [], []>} : vector<16x32xf32>, vector<32x16xf32>, vector<16x16xf32> -> vector<16x16xf32>
    %cst_43 = arith.constant 0.0150077688 : f32
    %50 = vector.broadcast %cst_43 : f32 to vector<16x16xf32>
    %51 = arith.mulf %49, %50 : vector<16x16xf32>
    %cst_44 = arith.constant -1.75209713 : f32
    %52 = vector.broadcast %cst_44 : f32 to vector<16x16xf32>
    %53 = arith.addf %51, %52 : vector<16x16xf32>
    %c4_45 = arith.constant 4 : index
    %c0_46 = arith.constant 0 : index
    %c0_47 = arith.constant 0 : index
    %54 = vector.load %arg3[%c4_45, %c0_46, %c0_47] : memref<6x16x16xf32, #tpu.memory_space<vmem>>, vector<1x16x16xf32>
    %55 = vector.shape_cast %54 : vector<1x16x16xf32> to vector<16x16xf32>
    %56 = vector.shape_cast %53 : vector<16x16xf32> to vector<1x16x16xf32>
    tpu.vector_store %arg3[%c4_45, %c0_46, %c0_47], %56 {strides = array<i32>} : memref<6x16x16xf32, #tpu.memory_space<vmem>>, vector<1x16x16xf32>,
    %c5 = arith.constant 5 : index
    %c0_48 = arith.constant 0 : index
    %c0_49 = arith.constant 0 : index
    %57 = vector.load %arg0[%c5, %c0_48, %c0_49] : memref<6x40x32xf32, #tpu.memory_space<vmem>>, vector<1x40x32xf32>
    %58 = vector.shape_cast %57 : vector<1x40x32xf32> to vector<40x32xf32>
    %cst_50 = arith.constant dense<0.000000e+00> : vector<16x32xf32>
    %59 = tpu.matmul %0, %58, %cst_50 {dimension_numbers = #tpu.dot_dimension_numbers<[1], [0], [0], [1], [0, 0, 1, 1], [], []>} : vector<16x40xf32>, vector<40x32xf32>, vector<16x32xf32> -> vector<16x32xf32>
    %cst_51 = arith.constant dense<0.000000e+00> : vector<16x16xf32>
    %60 = tpu.matmul %59, %1, %cst_51 {dimension_numbers = #tpu.dot_dimension_numbers<[1], [0], [0], [1], [0, 0, 1, 1], [], []>} : vector<16x32xf32>, vector<32x16xf32>, vector<16x16xf32> -> vector<16x16xf32>
    %cst_52 = arith.constant 0.0142200654 : f32
    %61 = vector.broadcast %cst_52 : f32 to vector<16x16xf32>
    %62 = arith.mulf %60, %61 : vector<16x16xf32>
    %cst_53 = arith.constant -1.48021972 : f32
    %63 = vector.broadcast %cst_53 : f32 to vector<16x16xf32>
    %64 = arith.addf %62, %63 : vector<16x16xf32>
    %c5_54 = arith.constant 5 : index
    %c0_55 = arith.constant 0 : index
    %c0_56 = arith.constant 0 : index
    %65 = vector.load %arg3[%c5_54, %c0_55, %c0_56] : memref<6x16x16xf32, #tpu.memory_space<vmem>>, vector<1x16x16xf32>
    %66 = vector.shape_cast %65 : vector<1x16x16xf32> to vector<16x16xf32>
    %67 = vector.shape_cast %64 : vector<16x16xf32> to vector<1x16x16xf32>
    tpu.vector_store %arg3[%c5_54, %c0_55, %c0_56], %67 {strides = array<i32>} : memref<6x16x16xf32, #tpu.memory_space<vmem>>, vector<1x16x16xf32>,
    return
  }
}

</mosaic_0001>

<llo_original>
// kernel: _lambda_.1
$region0: #{_lambda_.1}
  #allocation0 [shape = 'u32[]', space=smem, size = 0x4, offset = 0x4, fixed_abs, tag = 'smem constant byte address 0x4 - core index']
  #allocation1 [shape = 'u32[144,128]{1,0:T(1,128)}', space=vmem, size = 0x12000, scoped, tag = 'internal scratch']
  %s0 = inlined_call_operand.vmem [shape: f32[6,40,32], index: 0, kind: input, shape index: {}]
  %s1 = inlined_call_operand.vmem [shape: f32[16,40], index: 1, kind: input, shape index: {}]
  %s2 = inlined_call_operand.vmem [shape: f32[32,16], index: 2, kind: input, shape index: {}]
  %s3 = inlined_call_operand.hbm [shape: f32[6,16,16], index: 3, kind: output, shape index: {}]
  %s4 = sld [smem:[#allocation0]]
  $region22: #{_lambda_.1} parent=0
    _
  %s6 = ssub.s32 1, %s4
  %s7 = scalar_select 0, %s6, %s4
  $region1: #{_lambda_.1} parent=0
    #allocation2 [shape = 'u8[49152]{0}', space=vmem, size = 0xc000, scoped, tag = 'output window, operand 0, single buffered']
    #allocation3 [shape = 's32[1]{0}', space=sflag, size = 0x4, scoped, tag = 'scoped memory for _lambda_.1']
    %8 = vsyncpa [#allocation3], 0
    // Predicated region
    $region2: #{_lambda_.1} parent=1 // pred_check
      _
    $region3: #{_lambda_.1} parent=1 // pred_check_branch
      %10 = sbr.rel (0) target = $region5
    $region4: #{_lambda_.1} parent=1 // pred_region
      _
    $region5: #{_lambda_.1} parent=1 // pred_fallthru
      _
    // Predicated region
    $region6: #{_lambda_.1} parent=1 // pred_check
      _
    $region7: #{_lambda_.1} parent=1 // pred_check_branch
      %12 = sbr.rel (0) target = $region9
    $region8: #{_lambda_.1} parent=1 // pred_region
      _
    $region9: #{_lambda_.1} parent=1 // pred_fallthru
      _
    // Predicated region
    $region10: #{_lambda_.1} parent=1 // pred_check
      _
    $region11: #{_lambda_.1} parent=1 // pred_check_branch
      %14 = sbr.rel (0) target = $region13
    $region12: #{_lambda_.1} parent=1 // pred_region
      _
    $region13: #{_lambda_.1} parent=1 // pred_fallthru
      _
    %v15 = vld [vmem:[%s1] sm:$0xff]
    %v16 = vld [vmem:[%s1 + $0x8] sm:$0xff]
    %v17 = vld [vmem:[%s2] sm:$0xff]
    %v18 = vld [vmem:[%s2 + $0x8] sm:$0xff]
    %v19 = vld [vmem:[%s2 + $0x10] sm:$0xff]
    %v20 = vld [vmem:[%s2 + $0x18] sm:$0xff]
    %v21 = vld [vmem:[%s0] sm:$0xff]
    %v22 = vld [vmem:[%s0 + $0x8] sm:$0xff]
    %v23 = vld [vmem:[%s0 + $0x10] sm:$0xff]
    %v24 = vld [vmem:[%s0 + $0x18] sm:$0xff]
    %v25 = vld [vmem:[%s0 + $0x20] sm:$0xff]
    %vm26 = vcmask 326656
    %v28 = vsel %vm26, %v15, 0
    %v31 = vsel %vm26, %v16, 0
    %33 = vmatprep.subr.mxu0 0.0
    %34 = vmatpush1.msra.mxu0 %v21
    %35 = vmatprep.subr.mxu0 0.0
    %36 = vmatpush1.msra.mxu0 %v22
    %37 = vmatprep.subr.mxu0 0.0
    %38 = vmatpush1.msra.mxu0 %v23
    %39 = vmatprep.subr.mxu0 0.0
    %40 = vmatpush1.msra.mxu0 %v24
    %41 = vmatprep.subr.mxu0 0.0
    %42 = vmatpush1.msra.mxu0 %v25
    %43 = vmatprep.subr.mxu0 0.0
    %44 = vmatpush1.msra.mxu0 0.0
    %45 = vmatprep.subr.mxu0 0.0
    %46 = vmatpush1.msra.mxu0 0.0
    %47 = vmatprep.subr.mxu0 0.0
    %48 = vmatpush1.msra.mxu0 0.0
    %49 = vmatprep.subr.mxu0 0.0
    %50 = vmatpush1.msra.mxu0 0.0
    %51 = vmatprep.subr.mxu0 0.0
    %52 = vmatpush1.msra.mxu0 0.0
    %53 = vmatprep.subr.mxu0 0.0
    %54 = vmatpush1.msra.mxu0 0.0
    %55 = vmatprep.subr.mxu0 0.0
    %56 = vmatpush1.msra.mxu0 0.0
    %57 = vmatprep.subr.mxu0 0.0
    %58 = vmatpush1.msra.mxu0 0.0
    %59 = vmatprep.subr.mxu0 0.0
    %60 = vmatpush1.msra.mxu0 0.0
    %61 = vmatprep.subr.mxu0 0.0
    %62 = vmatpush1.msra.mxu0 0.0
    %63 = vmatprep.subr.mxu0 0.0
    %64 = vmatpush1.msra.mxu0 0.0
    %65 = vmatprep.subr.mxu0 0.0
    %66 = vmatpush1.msra.mxu0 0.0
    %67 = vmatprep.subr.mxu0 0.0
    %68 = vmatpush1.msra.mxu0 0.0
    %69 = vmatprep.subr.mxu0 0.0
    %70 = vmatpush1.msra.mxu0 0.0
    %71 = vmatprep.subr.mxu0 0.0
    %72 = vmatpush1.msra.mxu0 0.0
    %73 = vmatprep.subr.mxu0 0.0
    %74 = vmatpush1.msra.mxu0 0.0
    %75 = vmatprep.subr.mxu0 0.0
    %76 = vmatpush1.msra.mxu0 0.0
    %77 = vmatprep.subr.mxu0 0.0
    %78 = vmatpush1.msra.mxu0 0.0
    %79 = vmatprep.subr.mxu0 0.0
    %80 = vmatpush1.msra.mxu0 0.0
    %81 = vmatprep.subr.mxu0 0.0
    %82 = vmatpush1.msra.mxu0 0.0
    %83 = vmatprep.subr.mxu0 0.0
    %84 = vmatpush1.msra.mxu0 0.0
    %85 = vmatprep.subr.mxu0 0.0
    %86 = vmatpush1.msra.mxu0 0.0
    %87 = vmatprep.subr.mxu0 0.0
    %88 = vmatpush1.msra.mxu0 0.0
    %89 = vmatprep.subr.mxu0 0.0
    %90 = vmatpush1.msra.mxu0 0.0
    %91 = vmatprep.subr.mxu0 0.0
    %92 = vmatpush1.msra.mxu0 0.0
    %93 = vmatprep.subr.mxu0 0.0
    %94 = vmatpush1.msra.mxu0 0.0
    %95 = vmatprep.subr.mxu0 0.0
    %96 = vmatpush1.msra.mxu0 0.0
    %97 = vmatprep.mubr.f32.mxu0 0.0
    %98 = vmatmul.mubr.f32.gmra.mrb[0].mxu0 %v28
    %v99 = vpop.f32.mrb[0].mxu0
    %v100 = vadd.f32 0.0, %v99
    %v101 = vpop.f32.mrb[0].mxu0
    %102 = vmatprep.mubr.f32.mxu0 0.0
    %103 = vmatmul.mubr.f32.gmra.mrb[0].mxu0 %v31
    %v104 = vpop.f32.mrb[0].mxu0
    %v105 = vadd.f32 0.0, %v104
    %v106 = vpop.f32.mrb[0].mxu0
    %107 = vdwg.mxu0
    %vm108 = vcmask 261120
    %v110 = vsel %vm108, %v100, 0
    %v113 = vsel %vm108, %v105, 0
    %115 = vmatprep.subr.mxu0 0.0
    %116 = vmatpush1.msra.mxu0 %v17
    %117 = vmatprep.subr.mxu0 0.0
    %118 = vmatpush1.msra.mxu0 %v18
    %119 = vmatprep.subr.mxu0 0.0
    %120 = vmatpush1.msra.mxu0 %v19
    %121 = vmatprep.subr.mxu0 0.0
    %122 = vmatpush1.msra.mxu0 %v20
    %123 = vmatprep.subr.mxu0 0.0
    %124 = vmatpush1.msra.mxu0 0.0
    %125 = vmatprep.subr.mxu0 0.0
    %126 = vmatpush1.msra.mxu0 0.0
    %127 = vmatprep.subr.mxu0 0.0
    %128 = vmatpush1.msra.mxu0 0.0
    %129 = vmatprep.subr.mxu0 0.0
    %130 = vmatpush1.msra.mxu0 0.0
    %131 = vmatprep.subr.mxu0 0.0
    %132 = vmatpush1.msra.mxu0 0.0
    %133 = vmatprep.subr.mxu0 0.0
    %134 = vmatpush1.msra.mxu0 0.0
    %135 = vmatprep.subr.mxu0 0.0
    %136 = vmatpush1.msra.mxu0 0.0
    %137 = vmatprep.subr.mxu0 0.0
    %138 = vmatpush1.msra.mxu0 0.0
    %139 = vmatprep.subr.mxu0 0.0
    %140 = vmatpush1.msra.mxu0 0.0
    %141 = vmatprep.subr.mxu0 0.0
    %142 = vmatpush1.msra.mxu0 0.0
    %143 = vmatprep.subr.mxu0 0.0
    %144 = vmatpush1.msra.mxu0 0.0
    %145 = vmatprep.subr.mxu0 0.0
    %146 = vmatpush1.msra.mxu0 0.0
    %147 = vmatprep.subr.mxu0 0.0
    %148 = vmatpush1.msra.mxu0 0.0
    %149 = vmatprep.subr.mxu0 0.0
    %150 = vmatpush1.msra.mxu0 0.0
    %151 = vmatprep.subr.mxu0 0.0
    %152 = vmatpush1.msra.mxu0 0.0
    %153 = vmatprep.subr.mxu0 0.0
    %154 = vmatpush1.msra.mxu0 0.0
    %155 = vmatprep.subr.mxu0 0.0
    %156 = vmatpush1.msra.mxu0 0.0
    %157 = vmatprep.subr.mxu0 0.0
    %158 = vmatpush1.msra.mxu0 0.0
    %159 = vmatprep.subr.mxu0 0.0
    %160 = vmatpush1.msra.mxu0 0.0
    %161 = vmatprep.subr.mxu0 0.0
    %162 = vmatpush1.msra.mxu0 0.0
    %163 = vmatprep.subr.mxu0 0.0
    %164 = vmatpush1.msra.mxu0 0.0
    %165 = vmatprep.subr.mxu0 0.0
    %166 = vmatpush1.msra.mxu0 0.0
    %167 = vmatprep.subr.mxu0 0.0
    %168 = vmatpush1.msra.mxu0 0.0
    %169 = vmatprep.subr.mxu0 0.0
    %170 = vmatpush1.msra.mxu0 0.0
    %171 = vmatprep.subr.mxu0 0.0
    %172 = vmatpush1.msra.mxu0 0.0
    %173 = vmatprep.subr.mxu0 0.0
    %174 = vmatpush1.msra.mxu0 0.0
    %175 = vmatprep.subr.mxu0 0.0
    %176 = vmatpush1.msra.mxu0 0.0
    %177 = vmatprep.subr.mxu0 0.0
    %178 = vmatpush1.msra.mxu0 0.0
    %179 = vmatprep.mubr.f32.mxu0 0.0
    %180 = vmatmul.mubr.f32.gmra.mrb[0].mxu0 %v110
    %v181 = vpop.f32.mrb[0].mxu0
    %v182 = vadd.f32 0.0, %v181
    %v183 = vpop.f32.mrb[0].mxu0
    %184 = vmatprep.mubr.f32.mxu0 0.0
    %185 = vmatmul.mubr.f32.gmra.mrb[0].mxu0 %v113
    %v186 = vpop.f32.mrb[0].mxu0
    %v187 = vadd.f32 0.0, %v186
    %v188 = vpop.f32.mrb[0].mxu0
    %189 = vdwg.mxu0
    %v190 = vmul.f32 %v182, 0.014598426
    %v191 = vmul.f32 %v187, 0.014598426
    %v192 = vadd.f32 %v190, -1.7922626
    %v193 = vadd.f32 %v191, -1.7922626
    %vm194 = vcmask 130048
    %195 = vst.msk [vmem:[#allocation2] sm:$0xff] %vm194, %v192
    %196 = vst.msk [vmem:[#allocation2 + $0x8] sm:$0xff] %vm194, %v193
    %s197 = scalar_lea.vmem %s0, 40
    %v198 = vld [vmem:[%s197] sm:$0xff]
    %v199 = vld [vmem:[%s197 + $0x8] sm:$0xff]
    %v200 = vld [vmem:[%s197 + $0x10] sm:$0xff]
    %v201 = vld [vmem:[%s197 + $0x18] sm:$0xff]
    %v202 = vld [vmem:[%s197 + $0x20] sm:$0xff]
    %203 = vmatprep.subr.mxu0 0.0
    %204 = vmatpush1.msra.mxu0 %v198
    %205 = vmatprep.subr.mxu0 0.0
    %206 = vmatpush1.msra.mxu0 %v199
    %207 = vmatprep.subr.mxu0 0.0
    %208 = vmatpush1.msra.mxu0 %v200
    %209 = vmatprep.subr.mxu0 0.0
    %210 = vmatpush1.msra.mxu0 %v201
    %211 = vmatprep.subr.mxu0 0.0
    %212 = vmatpush1.msra.mxu0 %v202
    %213 = vmatprep.subr.mxu0 0.0
    %214 = vmatpush1.msra.mxu0 0.0
    %215 = vmatprep.subr.mxu0 0.0
    %216 = vmatpush1.msra.mxu0 0.0
    %217 = vmatprep.subr.mxu0 0.0
    %218 = vmatpush1.msra.mxu0 0.0
    %219 = vmatprep.subr.mxu0 0.0
    %220 = vmatpush1.msra.mxu0 0.0
    %221 = vmatprep.subr.mxu0 0.0
    %222 = vmatpush1.msra.mxu0 0.0
    %223 = vmatprep.subr.mxu0 0.0
    %224 = vmatpush1.msra.mxu0 0.0
    %225 = vmatprep.subr.mxu0 0.0
    %226 = vmatpush1.msra.mxu0 0.0
    %227 = vmatprep.subr.mxu0 0.0
    %228 = vmatpush1.msra.mxu0 0.0
    %229 = vmatprep.subr.mxu0 0.0
    %230 = vmatpush1.msra.mxu0 0.0
    %231 = vmatprep.subr.mxu0 0.0
    %232 = vmatpush1.msra.mxu0 0.0
    %233 = vmatprep.subr.mxu0 0.0
    %234 = vmatpush1.msra.mxu0 0.0
    %235 = vmatprep.subr.mxu0 0.0
    %236 = vmatpush1.msra.mxu0 0.0
    %237 = vmatprep.subr.mxu0 0.0
    %238 = vmatpush1.msra.mxu0 0.0
    %239 = vmatprep.subr.mxu0 0.0
    %240 = vmatpush1.msra.mxu0 0.0
    %241 = vmatprep.subr.mxu0 0.0
    %242 = vmatpush1.msra.mxu0 0.0
    %243 = vmatprep.subr.mxu0 0.0
    %244 = vmatpush1.msra.mxu0 0.0
    %245 = vmatprep.subr.mxu0 0.0
    %246 = vmatpush1.msra.mxu0 0.0
    %247 = vmatprep.subr.mxu0 0.0
    %248 = vmatpush1.msra.mxu0 0.0
    %249 = vmatprep.subr.mxu0 0.0
    %250 = vmatpush1.msra.mxu0 0.0
    %251 = vmatprep.subr.mxu0 0.0
    %252 = vmatpush1.msra.mxu0 0.0
    %253 = vmatprep.subr.mxu0 0.0
    %254 = vmatpush1.msra.mxu0 0.0
    %255 = vmatprep.subr.mxu0 0.0
    %256 = vmatpush1.msra.mxu0 0.0
    %257 = vmatprep.subr.mxu0 0.0
    %258 = vmatpush1.msra.mxu0 0.0
    %259 = vmatprep.subr.mxu0 0.0
    %260 = vmatpush1.msra.mxu0 0.0
    %261 = vmatprep.subr.mxu0 0.0
    %262 = vmatpush1.msra.mxu0 0.0
    %263 = vmatprep.subr.mxu0 0.0
    %264 = vmatpush1.msra.mxu0 0.0
    %265 = vmatprep.subr.mxu0 0.0
    %266 = vmatpush1.msra.mxu0 0.0
    %267 = vmatprep.mubr.f32.mxu0 0.0
    %268 = vmatmul.mubr.f32.gmra.mrb[0].mxu0 %v28
    %v269 = vpop.f32.mrb[0].mxu0
    %v270 = vadd.f32 0.0, %v269
    %v271 = vpop.f32.mrb[0].mxu0
    %272 = vmatprep.mubr.f32.mxu0 0.0
    %273 = vmatmul.mubr.f32.gmra.mrb[0].mxu0 %v31
    %v274 = vpop.f32.mrb[0].mxu0
    %v275 = vadd.f32 0.0, %v274
    %v276 = vpop.f32.mrb[0].mxu0
    %277 = vdwg.mxu0
    %v279 = vsel %vm108, %v270, 0
    %v282 = vsel %vm108, %v275, 0
    %284 = vmatprep.subr.mxu0 0.0
    %285 = vmatpush1.msra.mxu0 %v17
    %286 = vmatprep.subr.mxu0 0.0
    %287 = vmatpush1.msra.mxu0 %v18
    %288 = vmatprep.subr.mxu0 0.0
    %289 = vmatpush1.msra.mxu0 %v19
    %290 = vmatprep.subr.mxu0 0.0
    %291 = vmatpush1.msra.mxu0 %v20
    %292 = vmatprep.subr.mxu0 0.0
    %293 = vmatpush1.msra.mxu0 0.0
    %294 = vmatprep.subr.mxu0 0.0
    %295 = vmatpush1.msra.mxu0 0.0
    %296 = vmatprep.subr.mxu0 0.0
    %297 = vmatpush1.msra.mxu0 0.0
    %298 = vmatprep.subr.mxu0 0.0
    %299 = vmatpush1.msra.mxu0 0.0
    %300 = vmatprep.subr.mxu0 0.0
    %301 = vmatpush1.msra.mxu0 0.0
    %302 = vmatprep.subr.mxu0 0.0
    %303 = vmatpush1.msra.mxu0 0.0
    %304 = vmatprep.subr.mxu0 0.0
    %305 = vmatpush1.msra.mxu0 0.0
    %306 = vmatprep.subr.mxu0 0.0
    %307 = vmatpush1.msra.mxu0 0.0
    %308 = vmatprep.subr.mxu0 0.0
    %309 = vmatpush1.msra.mxu0 0.0
    %310 = vmatprep.subr.mxu0 0.0
    %311 = vmatpush1.msra.mxu0 0.0
    %312 = vmatprep.subr.mxu0 0.0
    %313 = vmatpush1.msra.mxu0 0.0
    %314 = vmatprep.subr.mxu0 0.0
    %315 = vmatpush1.msra.mxu0 0.0
    %316 = vmatprep.subr.mxu0 0.0
    %317 = vmatpush1.msra.mxu0 0.0
    %318 = vmatprep.subr.mxu0 0.0
    %319 = vmatpush1.msra.mxu0 0.0
    %320 = vmatprep.subr.mxu0 0.0
    %321 = vmatpush1.msra.mxu0 0.0
    %322 = vmatprep.subr.mxu0 0.0
    %323 = vmatpush1.msra.mxu0 0.0
    %324 = vmatprep.subr.mxu0 0.0
    %325 = vmatpush1.msra.mxu0 0.0
    %326 = vmatprep.subr.mxu0 0.0
    %327 = vmatpush1.msra.mxu0 0.0
    %328 = vmatprep.subr.mxu0 0.0
    %329 = vmatpush1.msra.mxu0 0.0
    %330 = vmatprep.subr.mxu0 0.0
    %331 = vmatpush1.msra.mxu0 0.0
    %332 = vmatprep.subr.mxu0 0.0
    %333 = vmatpush1.msra.mxu0 0.0
    %334 = vmatprep.subr.mxu0 0.0
    %335 = vmatpush1.msra.mxu0 0.0
    %336 = vmatprep.subr.mxu0 0.0
    %337 = vmatpush1.msra.mxu0 0.0
    %338 = vmatprep.subr.mxu0 0.0
    %339 = vmatpush1.msra.mxu0 0.0
    %340 = vmatprep.subr.mxu0 0.0
    %341 = vmatpush1.msra.mxu0 0.0
    %342 = vmatprep.subr.mxu0 0.0
    %343 = vmatpush1.msra.mxu0 0.0
    %344 = vmatprep.subr.mxu0 0.0
    %345 = vmatpush1.msra.mxu0 0.0
    %346 = vmatprep.subr.mxu0 0.0
    %347 = vmatpush1.msra.mxu0 0.0
    %348 = vmatprep.mubr.f32.mxu0 0.0
    %349 = vmatmul.mubr.f32.gmra.mrb[0].mxu0 %v279
    %v350 = vpop.f32.mrb[0].mxu0
    %v351 = vadd.f32 0.0, %v350
    %v352 = vpop.f32.mrb[0].mxu0
    %353 = vmatprep.mubr.f32.mxu0 0.0
    %354 = vmatmul.mubr.f32.gmra.mrb[0].mxu0 %v282
    %v355 = vpop.f32.mrb[0].mxu0
    %v356 = vadd.f32 0.0, %v355
    %v357 = vpop.f32.mrb[0].mxu0
    %358 = vdwg.mxu0
    %v359 = vmul.f32 %v351, 0.015007769
    %v360 = vmul.f32 %v356, 0.015007769
    %v361 = vadd.f32 %v359, -1.7520971
    %v362 = vadd.f32 %v360, -1.7520971
    %s363 = scalar_lea.vmem [#allocation2], 16
    %364 = vst.msk [vmem:[%s363] sm:$0xff] %vm194, %v361
    %365 = vst.msk [vmem:[%s363 + $0x8] sm:$0xff] %vm194, %v362
    %s366 = scalar_lea.vmem %s0, 80
    %v367 = vld [vmem:[%s366] sm:$0xff]
    %v368 = vld [vmem:[%s366 + $0x8] sm:$0xff]
    %v369 = vld [vmem:[%s366 + $0x10] sm:$0xff]
    %v370 = vld [vmem:[%s366 + $0x18] sm:$0xff]
    %v371 = vld [vmem:[%s366 + $0x20] sm:$0xff]
    %372 = vmatprep.subr.mxu0 0.0
    %373 = vmatpush1.msra.mxu0 %v367
    %374 = vmatprep.subr.mxu0 0.0
    %375 = vmatpush1.msra.mxu0 %v368
    %376 = vmatprep.subr.mxu0 0.0
    %377 = vmatpush1.msra.mxu0 %v369
    %378 = vmatprep.subr.mxu0 0.0
    %379 = vmatpush1.msra.mxu0 %v370
    %380 = vmatprep.subr.mxu0 0.0
    %381 = vmatpush1.msra.mxu0 %v371
    %382 = vmatprep.subr.mxu0 0.0
    %383 = vmatpush1.msra.mxu0 0.0
    %384 = vmatprep.subr.mxu0 0.0
    %385 = vmatpush1.msra.mxu0 0.0
    %386 = vmatprep.subr.mxu0 0.0
    %387 = vmatpush1.msra.mxu0 0.0
    %388 = vmatprep.subr.mxu0 0.0
    %389 = vmatpush1.msra.mxu0 0.0
    %390 = vmatprep.subr.mxu0 0.0
    %391 = vmatpush1.msra.mxu0 0.0
    %392 = vmatprep.subr.mxu0 0.0
    %393 = vmatpush1.msra.mxu0 0.0
    %394 = vmatprep.subr.mxu0 0.0
    %395 = vmatpush1.msra.mxu0 0.0
    %396 = vmatprep.subr.mxu0 0.0
    %397 = vmatpush1.msra.mxu0 0.0
    %398 = vmatprep.subr.mxu0 0.0
    %399 = vmatpush1.msra.mxu0 0.0
    %400 = vmatprep.subr.mxu0 0.0
    %401 = vmatpush1.msra.mxu0 0.0
    %402 = vmatprep.subr.mxu0 0.0
    %403 = vmatpush1.msra.mxu0 0.0
    %404 = vmatprep.subr.mxu0 0.0
    %405 = vmatpush1.msra.mxu0 0.0
    %406 = vmatprep.subr.mxu0 0.0
    %407 = vmatpush1.msra.mxu0 0.0
    %408 = vmatprep.subr.mxu0 0.0
    %409 = vmatpush1.msra.mxu0 0.0
    %410 = vmatprep.subr.mxu0 0.0
    %411 = vmatpush1.msra.mxu0 0.0
    %412 = vmatprep.subr.mxu0 0.0
    %413 = vmatpush1.msra.mxu0 0.0
    %414 = vmatprep.subr.mxu0 0.0
    %415 = vmatpush1.msra.mxu0 0.0
    %416 = vmatprep.subr.mxu0 0.0
    %417 = vmatpush1.msra.mxu0 0.0
    %418 = vmatprep.subr.mxu0 0.0
    %419 = vmatpush1.msra.mxu0 0.0
    %420 = vmatprep.subr.mxu0 0.0
    %421 = vmatpush1.msra.mxu0 0.0
    %422 = vmatprep.subr.mxu0 0.0
    %423 = vmatpush1.msra.mxu0 0.0
    %424 = vmatprep.subr.mxu0 0.0
    %425 = vmatpush1.msra.mxu0 0.0
    %426 = vmatprep.subr.mxu0 0.0
    %427 = vmatpush1.msra.mxu0 0.0
    %428 = vmatprep.subr.mxu0 0.0
    %429 = vmatpush1.msra.mxu0 0.0
    %430 = vmatprep.subr.mxu0 0.0
    %431 = vmatpush1.msra.mxu0 0.0
    %432 = vmatprep.subr.mxu0 0.0
    %433 = vmatpush1.msra.mxu0 0.0
    %434 = vmatprep.subr.mxu0 0.0
    %435 = vmatpush1.msra.mxu0 0.0
    %436 = vmatprep.mubr.f32.mxu0 0.0
    %437 = vmatmul.mubr.f32.gmra.mrb[0].mxu0 %v28
    %v438 = vpop.f32.mrb[0].mxu0
    %v439 = vadd.f32 0.0, %v438
    %v440 = vpop.f32.mrb[0].mxu0
    %441 = vmatprep.mubr.f32.mxu0 0.0
    %442 = vmatmul.mubr.f32.gmra.mrb[0].mxu0 %v31
    %v443 = vpop.f32.mrb[0].mxu0
    %v444 = vadd.f32 0.0, %v443
    %v445 = vpop.f32.mrb[0].mxu0
    %446 = vdwg.mxu0
    %v448 = vsel %vm108, %v439, 0
    %v451 = vsel %vm108, %v444, 0
    %453 = vmatprep.subr.mxu0 0.0
    %454 = vmatpush1.msra.mxu0 %v17
    %455 = vmatprep.subr.mxu0 0.0
    %456 = vmatpush1.msra.mxu0 %v18
    %457 = vmatprep.subr.mxu0 0.0
    %458 = vmatpush1.msra.mxu0 %v19
    %459 = vmatprep.subr.mxu0 0.0
    %460 = vmatpush1.msra.mxu0 %v20
    %461 = vmatprep.subr.mxu0 0.0
    %462 = vmatpush1.msra.mxu0 0.0
    %463 = vmatprep.subr.mxu0 0.0
    %464 = vmatpush1.msra.mxu0 0.0
    %465 = vmatprep.subr.mxu0 0.0
    %466 = vmatpush1.msra.mxu0 0.0
    %467 = vmatprep.subr.mxu0 0.0
    %468 = vmatpush1.msra.mxu0 0.0
    %469 = vmatprep.subr.mxu0 0.0
    %470 = vmatpush1.msra.mxu0 0.0
    %471 = vmatprep.subr.mxu0 0.0
    %472 = vmatpush1.msra.mxu0 0.0
    %473 = vmatprep.subr.mxu0 0.0
    %474 = vmatpush1.msra.mxu0 0.0
    %475 = vmatprep.subr.mxu0 0.0
    %476 = vmatpush1.msra.mxu0 0.0
    %477 = vmatprep.subr.mxu0 0.0
    %478 = vmatpush1.msra.mxu0 0.0
    %479 = vmatprep.subr.mxu0 0.0
    %480 = vmatpush1.msra.mxu0 0.0
    %481 = vmatprep.subr.mxu0 0.0
    %482 = vmatpush1.msra.mxu0 0.0
    %483 = vmatprep.subr.mxu0 0.0
    %484 = vmatpush1.msra.mxu0 0.0
    %485 = vmatprep.subr.mxu0 0.0
    %486 = vmatpush1.msra.mxu0 0.0
    %487 = vmatprep.subr.mxu0 0.0
    %488 = vmatpush1.msra.mxu0 0.0
    %489 = vmatprep.subr.mxu0 0.0
    %490 = vmatpush1.msra.mxu0 0.0
    %491 = vmatprep.subr.mxu0 0.0
    %492 = vmatpush1.msra.mxu0 0.0
    %493 = vmatprep.subr.mxu0 0.0
    %494 = vmatpush1.msra.mxu0 0.0
    %495 = vmatprep.subr.mxu0 0.0
    %496 = vmatpush1.msra.mxu0 0.0
    %497 = vmatprep.subr.mxu0 0.0
    %498 = vmatpush1.msra.mxu0 0.0
    %499 = vmatprep.subr.mxu0 0.0
    %500 = vmatpush1.msra.mxu0 0.0
    %501 = vmatprep.subr.mxu0 0.0
    %502 = vmatpush1.msra.mxu0 0.0
    %503 = vmatprep.subr.mxu0 0.0
    %504 = vmatpush1.msra.mxu0 0.0
    %505 = vmatprep.subr.mxu0 0.0
    %506 = vmatpush1.msra.mxu0 0.0
    %507 = vmatprep.subr.mxu0 0.0
    %508 = vmatpush1.msra.mxu0 0.0
    %509 = vmatprep.subr.mxu0 0.0
    %510 = vmatpush1.msra.mxu0 0.0
    %511 = vmatprep.subr.mxu0 0.0
    %512 = vmatpush1.msra.mxu0 0.0
    %513 = vmatprep.subr.mxu0 0.0
    %514 = vmatpush1.msra.mxu0 0.0
    %515 = vmatprep.subr.mxu0 0.0
    %516 = vmatpush1.msra.mxu0 0.0
    %517 = vmatprep.mubr.f32.mxu0 0.0
    %518 = vmatmul.mubr.f32.gmra.mrb[0].mxu0 %v448
    %v519 = vpop.f32.mrb[0].mxu0
    %v520 = vadd.f32 0.0, %v519
    %v521 = vpop.f32.mrb[0].mxu0
    %522 = vmatprep.mubr.f32.mxu0 0.0
    %523 = vmatmul.mubr.f32.gmra.mrb[0].mxu0 %v451
    %v524 = vpop.f32.mrb[0].mxu0
    %v525 = vadd.f32 0.0, %v524
    %v526 = vpop.f32.mrb[0].mxu0
    %527 = vdwg.mxu0
    %v528 = vmul.f32 %v520, 0.014220065
    %v529 = vmul.f32 %v525, 0.014220065
    %v530 = vadd.f32 %v528, -1.4802197
    %v531 = vadd.f32 %v529, -1.4802197
    %s532 = scalar_lea.vmem [#allocation2], 32
    %533 = vst.msk [vmem:[%s532] sm:$0xff] %vm194, %v530
    %534 = vst.msk [vmem:[%s532 + $0x8] sm:$0xff] %vm194, %v531
    %s535 = scalar_lea.vmem %s0, 120
    %v536 = vld [vmem:[%s535] sm:$0xff]
    %v537 = vld [vmem:[%s535 + $0x8] sm:$0xff]
    %v538 = vld [vmem:[%s535 + $0x10] sm:$0xff]
    %v539 = vld [vmem:[%s535 + $0x18] sm:$0xff]
    %v540 = vld [vmem:[%s535 + $0x20] sm:$0xff]
    %541 = vmatprep.subr.mxu0 0.0
    %542 = vmatpush1.msra.mxu0 %v536
    %543 = vmatprep.subr.mxu0 0.0
    %544 = vmatpush1.msra.mxu0 %v537
    %545 = vmatprep.subr.mxu0 0.0
    %546 = vmatpush1.msra.mxu0 %v538
    %547 = vmatprep.subr.mxu0 0.0
    %548 = vmatpush1.msra.mxu0 %v539
    %549 = vmatprep.subr.mxu0 0.0
    %550 = vmatpush1.msra.mxu0 %v540
    %551 = vmatprep.subr.mxu0 0.0
    %552 = vmatpush1.msra.mxu0 0.0
    %553 = vmatprep.subr.mxu0 0.0
    %554 = vmatpush1.msra.mxu0 0.0
    %555 = vmatprep.subr.mxu0 0.0
    %556 = vmatpush1.msra.mxu0 0.0
    %557 = vmatprep.subr.mxu0 0.0
    %558 = vmatpush1.msra.mxu0 0.0
    %559 = vmatprep.subr.mxu0 0.0
    %560 = vmatpush1.msra.mxu0 0.0
    %561 = vmatprep.subr.mxu0 0.0
    %562 = vmatpush1.msra.mxu0 0.0
    %563 = vmatprep.subr.mxu0 0.0
    %564 = vmatpush1.msra.mxu0 0.0
    %565 = vmatprep.subr.mxu0 0.0
    %566 = vmatpush1.msra.mxu0 0.0
    %567 = vmatprep.subr.mxu0 0.0
    %568 = vmatpush1.msra.mxu0 0.0
    %569 = vmatprep.subr.mxu0 0.0
    %570 = vmatpush1.msra.mxu0 0.0
    %571 = vmatprep.subr.mxu0 0.0
    %572 = vmatpush1.msra.mxu0 0.0
    %573 = vmatprep.subr.mxu0 0.0
    %574 = vmatpush1.msra.mxu0 0.0
    %575 = vmatprep.subr.mxu0 0.0
    %576 = vmatpush1.msra.mxu0 0.0
    %577 = vmatprep.subr.mxu0 0.0
    %578 = vmatpush1.msra.mxu0 0.0
    %579 = vmatprep.subr.mxu0 0.0
    %580 = vmatpush1.msra.mxu0 0.0
    %581 = vmatprep.subr.mxu0 0.0
    %582 = vmatpush1.msra.mxu0 0.0
    %583 = vmatprep.subr.mxu0 0.0
    %584 = vmatpush1.msra.mxu0 0.0
    %585 = vmatprep.subr.mxu0 0.0
    %586 = vmatpush1.msra.mxu0 0.0
    %587 = vmatprep.subr.mxu0 0.0
    %588 = vmatpush1.msra.mxu0 0.0
    %589 = vmatprep.subr.mxu0 0.0
    %590 = vmatpush1.msra.mxu0 0.0
    %591 = vmatprep.subr.mxu0 0.0
    %592 = vmatpush1.msra.mxu0 0.0
    %593 = vmatprep.subr.mxu0 0.0
    %594 = vmatpush1.msra.mxu0 0.0
    %595 = vmatprep.subr.mxu0 0.0
    %596 = vmatpush1.msra.mxu0 0.0
    %597 = vmatprep.subr.mxu0 0.0
    %598 = vmatpush1.msra.mxu0 0.0
    %599 = vmatprep.subr.mxu0 0.0
    %600 = vmatpush1.msra.mxu0 0.0
    %601 = vmatprep.subr.mxu0 0.0
    %602 = vmatpush1.msra.mxu0 0.0
    %603 = vmatprep.subr.mxu0 0.0
    %604 = vmatpush1.msra.mxu0 0.0
    %605 = vmatprep.mubr.f32.mxu0 0.0
    %606 = vmatmul.mubr.f32.gmra.mrb[0].mxu0 %v28
    %v607 = vpop.f32.mrb[0].mxu0
    %v608 = vadd.f32 0.0, %v607
    %v609 = vpop.f32.mrb[0].mxu0
    %610 = vmatprep.mubr.f32.mxu0 0.0
    %611 = vmatmul.mubr.f32.gmra.mrb[0].mxu0 %v31
    %v612 = vpop.f32.mrb[0].mxu0
    %v613 = vadd.f32 0.0, %v612
    %v614 = vpop.f32.mrb[0].mxu0
    %615 = vdwg.mxu0
    %v617 = vsel %vm108, %v608, 0
    %v620 = vsel %vm108, %v613, 0
    %622 = vmatprep.subr.mxu0 0.0
    %623 = vmatpush1.msra.mxu0 %v17
    %624 = vmatprep.subr.mxu0 0.0
    %625 = vmatpush1.msra.mxu0 %v18
    %626 = vmatprep.subr.mxu0 0.0
    %627 = vmatpush1.msra.mxu0 %v19
    %628 = vmatprep.subr.mxu0 0.0
    %629 = vmatpush1.msra.mxu0 %v20
    %630 = vmatprep.subr.mxu0 0.0
    %631 = vmatpush1.msra.mxu0 0.0
    %632 = vmatprep.subr.mxu0 0.0
    %633 = vmatpush1.msra.mxu0 0.0
    %634 = vmatprep.subr.mxu0 0.0
    %635 = vmatpush1.msra.mxu0 0.0
    %636 = vmatprep.subr.mxu0 0.0
    %637 = vmatpush1.msra.mxu0 0.0
    %638 = vmatprep.subr.mxu0 0.0
    %639 = vmatpush1.msra.mxu0 0.0
    %640 = vmatprep.subr.mxu0 0.0
    %641 = vmatpush1.msra.mxu0 0.0
    %642 = vmatprep.subr.mxu0 0.0
    %643 = vmatpush1.msra.mxu0 0.0
    %644 = vmatprep.subr.mxu0 0.0
    %645 = vmatpush1.msra.mxu0 0.0
    %646 = vmatprep.subr.mxu0 0.0
    %647 = vmatpush1.msra.mxu0 0.0
    %648 = vmatprep.subr.mxu0 0.0
    %649 = vmatpush1.msra.mxu0 0.0
    %650 = vmatprep.subr.mxu0 0.0
    %651 = vmatpush1.msra.mxu0 0.0
    %652 = vmatprep.subr.mxu0 0.0
    %653 = vmatpush1.msra.mxu0 0.0
    %654 = vmatprep.subr.mxu0 0.0
    %655 = vmatpush1.msra.mxu0 0.0
    %656 = vmatprep.subr.mxu0 0.0
    %657 = vmatpush1.msra.mxu0 0.0
    %658 = vmatprep.subr.mxu0 0.0
    %659 = vmatpush1.msra.mxu0 0.0
    %660 = vmatprep.subr.mxu0 0.0
    %661 = vmatpush1.msra.mxu0 0.0
    %662 = vmatprep.subr.mxu0 0.0
    %663 = vmatpush1.msra.mxu0 0.0
    %664 = vmatprep.subr.mxu0 0.0
    %665 = vmatpush1.msra.mxu0 0.0
    %666 = vmatprep.subr.mxu0 0.0
    %667 = vmatpush1.msra.mxu0 0.0
    %668 = vmatprep.subr.mxu0 0.0
    %669 = vmatpush1.msra.mxu0 0.0
    %670 = vmatprep.subr.mxu0 0.0
    %671 = vmatpush1.msra.mxu0 0.0
    %672 = vmatprep.subr.mxu0 0.0
    %673 = vmatpush1.msra.mxu0 0.0
    %674 = vmatprep.subr.mxu0 0.0
    %675 = vmatpush1.msra.mxu0 0.0
    %676 = vmatprep.subr.mxu0 0.0
    %677 = vmatpush1.msra.mxu0 0.0
    %678 = vmatprep.subr.mxu0 0.0
    %679 = vmatpush1.msra.mxu0 0.0
    %680 = vmatprep.subr.mxu0 0.0
    %681 = vmatpush1.msra.mxu0 0.0
    %682 = vmatprep.subr.mxu0 0.0
    %683 = vmatpush1.msra.mxu0 0.0
    %684 = vmatprep.subr.mxu0 0.0
    %685 = vmatpush1.msra.mxu0 0.0
    %686 = vmatprep.mubr.f32.mxu0 0.0
    %687 = vmatmul.mubr.f32.gmra.mrb[0].mxu0 %v617
    %v688 = vpop.f32.mrb[0].mxu0
    %v689 = vadd.f32 0.0, %v688
    %v690 = vpop.f32.mrb[0].mxu0
    %691 = vmatprep.mubr.f32.mxu0 0.0
    %692 = vmatmul.mubr.f32.gmra.mrb[0].mxu0 %v620
    %v693 = vpop.f32.mrb[0].mxu0
    %v694 = vadd.f32 0.0, %v693
    %v695 = vpop.f32.mrb[0].mxu0
    %696 = vdwg.mxu0
    %v697 = vmul.f32 %v689, 0.014598426
    %v698 = vmul.f32 %v694, 0.014598426
    %v699 = vadd.f32 %v697, -1.7922626
    %v700 = vadd.f32 %v698, -1.7922626
    %s701 = scalar_lea.vmem [#allocation2], 48
    %702 = vst.msk [vmem:[%s701] sm:$0xff] %vm194, %v699
    %703 = vst.msk [vmem:[%s701 + $0x8] sm:$0xff] %vm194, %v700
    %s704 = scalar_lea.vmem %s0, 160
    %v705 = vld [vmem:[%s704] sm:$0xff]
    %v706 = vld [vmem:[%s704 + $0x8] sm:$0xff]
    %v707 = vld [vmem:[%s704 + $0x10] sm:$0xff]
    %v708 = vld [vmem:[%s704 + $0x18] sm:$0xff]
    %v709 = vld [vmem:[%s704 + $0x20] sm:$0xff]
    %710 = vmatprep.subr.mxu0 0.0
    %711 = vmatpush1.msra.mxu0 %v705
    %712 = vmatprep.subr.mxu0 0.0
    %713 = vmatpush1.msra.mxu0 %v706
    %714 = vmatprep.subr.mxu0 0.0
    %715 = vmatpush1.msra.mxu0 %v707
    %716 = vmatprep.subr.mxu0 0.0
    %717 = vmatpush1.msra.mxu0 %v708
    %718 = vmatprep.subr.mxu0 0.0
    %719 = vmatpush1.msra.mxu0 %v709
    %720 = vmatprep.subr.mxu0 0.0
    %721 = vmatpush1.msra.mxu0 0.0
    %722 = vmatprep.subr.mxu0 0.0
    %723 = vmatpush1.msra.mxu0 0.0
    %724 = vmatprep.subr.mxu0 0.0
    %725 = vmatpush1.msra.mxu0 0.0
    %726 = vmatprep.subr.mxu0 0.0
    %727 = vmatpush1.msra.mxu0 0.0
    %728 = vmatprep.subr.mxu0 0.0
    %729 = vmatpush1.msra.mxu0 0.0
    %730 = vmatprep.subr.mxu0 0.0
    %731 = vmatpush1.msra.mxu0 0.0
    %732 = vmatprep.subr.mxu0 0.0
    %733 = vmatpush1.msra.mxu0 0.0
    %734 = vmatprep.subr.mxu0 0.0
    %735 = vmatpush1.msra.mxu0 0.0
    %736 = vmatprep.subr.mxu0 0.0
    %737 = vmatpush1.msra.mxu0 0.0
    %738 = vmatprep.subr.mxu0 0.0
    %739 = vmatpush1.msra.mxu0 0.0
    %740 = vmatprep.subr.mxu0 0.0
    %741 = vmatpush1.msra.mxu0 0.0
    %742 = vmatprep.subr.mxu0 0.0
    %743 = vmatpush1.msra.mxu0 0.0
    %744 = vmatprep.subr.mxu0 0.0
    %745 = vmatpush1.msra.mxu0 0.0
    %746 = vmatprep.subr.mxu0 0.0
    %747 = vmatpush1.msra.mxu0 0.0
    %748 = vmatprep.subr.mxu0 0.0
    %749 = vmatpush1.msra.mxu0 0.0
    %750 = vmatprep.subr.mxu0 0.0
    %751 = vmatpush1.msra.mxu0 0.0
    %752 = vmatprep.subr.mxu0 0.0
    %753 = vmatpush1.msra.mxu0 0.0
    %754 = vmatprep.subr.mxu0 0.0
    %755 = vmatpush1.msra.mxu0 0.0
    %756 = vmatprep.subr.mxu0 0.0
    %757 = vmatpush1.msra.mxu0 0.0
    %758 = vmatprep.subr.mxu0 0.0
    %759 = vmatpush1.msra.mxu0 0.0
    %760 = vmatprep.subr.mxu0 0.0
    %761 = vmatpush1.msra.mxu0 0.0
    %762 = vmatprep.subr.mxu0 0.0
    %763 = vmatpush1.msra.mxu0 0.0
    %764 = vmatprep.subr.mxu0 0.0
    %765 = vmatpush1.msra.mxu0 0.0
    %766 = vmatprep.subr.mxu0 0.0
    %767 = vmatpush1.msra.mxu0 0.0
    %768 = vmatprep.subr.mxu0 0.0
    %769 = vmatpush1.msra.mxu0 0.0
    %770 = vmatprep.subr.mxu0 0.0
    %771 = vmatpush1.msra.mxu0 0.0
    %772 = vmatprep.subr.mxu0 0.0
    %773 = vmatpush1.msra.mxu0 0.0
    %774 = vmatprep.mubr.f32.mxu0 0.0
    %775 = vmatmul.mubr.f32.gmra.mrb[0].mxu0 %v28
    %v776 = vpop.f32.mrb[0].mxu0
    %v777 = vadd.f32 0.0, %v776
    %v778 = vpop.f32.mrb[0].mxu0
    %779 = vmatprep.mubr.f32.mxu0 0.0
    %780 = vmatmul.mubr.f32.gmra.mrb[0].mxu0 %v31
    %v781 = vpop.f32.mrb[0].mxu0
    %v782 = vadd.f32 0.0, %v781
    %v783 = vpop.f32.mrb[0].mxu0
    %784 = vdwg.mxu0
    %v786 = vsel %vm108, %v777, 0
    %v789 = vsel %vm108, %v782, 0
    %791 = vmatprep.subr.mxu0 0.0
    %792 = vmatpush1.msra.mxu0 %v17
    %793 = vmatprep.subr.mxu0 0.0
    %794 = vmatpush1.msra.mxu0 %v18
    %795 = vmatprep.subr.mxu0 0.0
    %796 = vmatpush1.msra.mxu0 %v19
    %797 = vmatprep.subr.mxu0 0.0
    %798 = vmatpush1.msra.mxu0 %v20
    %799 = vmatprep.subr.mxu0 0.0
    %800 = vmatpush1.msra.mxu0 0.0
    %801 = vmatprep.subr.mxu0 0.0
    %802 = vmatpush1.msra.mxu0 0.0
    %803 = vmatprep.subr.mxu0 0.0
    %804 = vmatpush1.msra.mxu0 0.0
    %805 = vmatprep.subr.mxu0 0.0
    %806 = vmatpush1.msra.mxu0 0.0
    %807 = vmatprep.subr.mxu0 0.0
    %808 = vmatpush1.msra.mxu0 0.0
    %809 = vmatprep.subr.mxu0 0.0
    %810 = vmatpush1.msra.mxu0 0.0
    %811 = vmatprep.subr.mxu0 0.0
    %812 = vmatpush1.msra.mxu0 0.0
    %813 = vmatprep.subr.mxu0 0.0
    %814 = vmatpush1.msra.mxu0 0.0
    %815 = vmatprep.subr.mxu0 0.0
    %816 = vmatpush1.msra.mxu0 0.0
    %817 = vmatprep.subr.mxu0 0.0
    %818 = vmatpush1.msra.mxu0 0.0
    %819 = vmatprep.subr.mxu0 0.0
    %820 = vmatpush1.msra.mxu0 0.0
    %821 = vmatprep.subr.mxu0 0.0
    %822 = vmatpush1.msra.mxu0 0.0
    %823 = vmatprep.subr.mxu0 0.0
    %824 = vmatpush1.msra.mxu0 0.0
    %825 = vmatprep.subr.mxu0 0.0
    %826 = vmatpush1.msra.mxu0 0.0
    %827 = vmatprep.subr.mxu0 0.0
    %828 = vmatpush1.msra.mxu0 0.0
    %829 = vmatprep.subr.mxu0 0.0
    %830 = vmatpush1.msra.mxu0 0.0
    %831 = vmatprep.subr.mxu0 0.0
    %832 = vmatpush1.msra.mxu0 0.0
    %833 = vmatprep.subr.mxu0 0.0
    %834 = vmatpush1.msra.mxu0 0.0
    %835 = vmatprep.subr.mxu0 0.0
    %836 = vmatpush1.msra.mxu0 0.0
    %837 = vmatprep.subr.mxu0 0.0
    %838 = vmatpush1.msra.mxu0 0.0
    %839 = vmatprep.subr.mxu0 0.0
    %840 = vmatpush1.msra.mxu0 0.0
    %841 = vmatprep.subr.mxu0 0.0
    %842 = vmatpush1.msra.mxu0 0.0
    %843 = vmatprep.subr.mxu0 0.0
    %844 = vmatpush1.msra.mxu0 0.0
    %845 = vmatprep.subr.mxu0 0.0
    %846 = vmatpush1.msra.mxu0 0.0
    %847 = vmatprep.subr.mxu0 0.0
    %848 = vmatpush1.msra.mxu0 0.0
    %849 = vmatprep.subr.mxu0 0.0
    %850 = vmatpush1.msra.mxu0 0.0
    %851 = vmatprep.subr.mxu0 0.0
    %852 = vmatpush1.msra.mxu0 0.0
    %853 = vmatprep.subr.mxu0 0.0
    %854 = vmatpush1.msra.mxu0 0.0
    %855 = vmatprep.mubr.f32.mxu0 0.0
    %856 = vmatmul.mubr.f32.gmra.mrb[0].mxu0 %v786
    %v857 = vpop.f32.mrb[0].mxu0
    %v858 = vadd.f32 0.0, %v857
    %v859 = vpop.f32.mrb[0].mxu0
    %860 = vmatprep.mubr.f32.mxu0 0.0
    %861 = vmatmul.mubr.f32.gmra.mrb[0].mxu0 %v789
    %v862 = vpop.f32.mrb[0].mxu0
    %v863 = vadd.f32 0.0, %v862
    %v864 = vpop.f32.mrb[0].mxu0
    %865 = vdwg.mxu0
    %v866 = vmul.f32 %v858, 0.015007769
    %v867 = vmul.f32 %v863, 0.015007769
    %v868 = vadd.f32 %v866, -1.7520971
    %v869 = vadd.f32 %v867, -1.7520971
    %s870 = scalar_lea.vmem [#allocation2], 64
    %871 = vst.msk [vmem:[%s870] sm:$0xff] %vm194, %v868
    %872 = vst.msk [vmem:[%s870 + $0x8] sm:$0xff] %vm194, %v869
    %s873 = scalar_lea.vmem %s0, 200
    %v874 = vld [vmem:[%s873] sm:$0xff]
    %v875 = vld [vmem:[%s873 + $0x8] sm:$0xff]
    %v876 = vld [vmem:[%s873 + $0x10] sm:$0xff]
    %v877 = vld [vmem:[%s873 + $0x18] sm:$0xff]
    %v878 = vld [vmem:[%s873 + $0x20] sm:$0xff]
    %879 = vmatprep.subr.mxu0 0.0
    %880 = vmatpush1.msra.mxu0 %v874
    %881 = vmatprep.subr.mxu0 0.0
    %882 = vmatpush1.msra.mxu0 %v875
    %883 = vmatprep.subr.mxu0 0.0
    %884 = vmatpush1.msra.mxu0 %v876
    %885 = vmatprep.subr.mxu0 0.0
    %886 = vmatpush1.msra.mxu0 %v877
    %887 = vmatprep.subr.mxu0 0.0
    %888 = vmatpush1.msra.mxu0 %v878
    %889 = vmatprep.subr.mxu0 0.0
    %890 = vmatpush1.msra.mxu0 0.0
    %891 = vmatprep.subr.mxu0 0.0
    %892 = vmatpush1.msra.mxu0 0.0
    %893 = vmatprep.subr.mxu0 0.0
    %894 = vmatpush1.msra.mxu0 0.0
    %895 = vmatprep.subr.mxu0 0.0
    %896 = vmatpush1.msra.mxu0 0.0
    %897 = vmatprep.subr.mxu0 0.0
    %898 = vmatpush1.msra.mxu0 0.0
    %899 = vmatprep.subr.mxu0 0.0
    %900 = vmatpush1.msra.mxu0 0.0
    %901 = vmatprep.subr.mxu0 0.0
    %902 = vmatpush1.msra.mxu0 0.0
    %903 = vmatprep.subr.mxu0 0.0
    %904 = vmatpush1.msra.mxu0 0.0
    %905 = vmatprep.subr.mxu0 0.0
    %906 = vmatpush1.msra.mxu0 0.0
    %907 = vmatprep.subr.mxu0 0.0
    %908 = vmatpush1.msra.mxu0 0.0
    %909 = vmatprep.subr.mxu0 0.0
    %910 = vmatpush1.msra.mxu0 0.0
    %911 = vmatprep.subr.mxu0 0.0
    %912 = vmatpush1.msra.mxu0 0.0
    %913 = vmatprep.subr.mxu0 0.0
    %914 = vmatpush1.msra.mxu0 0.0
    %915 = vmatprep.subr.mxu0 0.0
    %916 = vmatpush1.msra.mxu0 0.0
    %917 = vmatprep.subr.mxu0 0.0
    %918 = vmatpush1.msra.mxu0 0.0
    %919 = vmatprep.subr.mxu0 0.0
    %920 = vmatpush1.msra.mxu0 0.0
    %921 = vmatprep.subr.mxu0 0.0
    %922 = vmatpush1.msra.mxu0 0.0
    %923 = vmatprep.subr.mxu0 0.0
    %924 = vmatpush1.msra.mxu0 0.0
    %925 = vmatprep.subr.mxu0 0.0
    %926 = vmatpush1.msra.mxu0 0.0
    %927 = vmatprep.subr.mxu0 0.0
    %928 = vmatpush1.msra.mxu0 0.0
    %929 = vmatprep.subr.mxu0 0.0
    %930 = vmatpush1.msra.mxu0 0.0
    %931 = vmatprep.subr.mxu0 0.0
    %932 = vmatpush1.msra.mxu0 0.0
    %933 = vmatprep.subr.mxu0 0.0
    %934 = vmatpush1.msra.mxu0 0.0
    %935 = vmatprep.subr.mxu0 0.0
    %936 = vmatpush1.msra.mxu0 0.0
    %937 = vmatprep.subr.mxu0 0.0
    %938 = vmatpush1.msra.mxu0 0.0
    %939 = vmatprep.subr.mxu0 0.0
    %940 = vmatpush1.msra.mxu0 0.0
    %941 = vmatprep.subr.mxu0 0.0
    %942 = vmatpush1.msra.mxu0 0.0
    %943 = vmatprep.mubr.f32.mxu0 0.0
    %944 = vmatmul.mubr.f32.gmra.mrb[0].mxu0 %v28
    %v945 = vpop.f32.mrb[0].mxu0
    %v946 = vadd.f32 0.0, %v945
    %v947 = vpop.f32.mrb[0].mxu0
    %948 = vmatprep.mubr.f32.mxu0 0.0
    %949 = vmatmul.mubr.f32.gmra.mrb[0].mxu0 %v31
    %v950 = vpop.f32.mrb[0].mxu0
    %v951 = vadd.f32 0.0, %v950
    %v952 = vpop.f32.mrb[0].mxu0
    %953 = vdwg.mxu0
    %v955 = vsel %vm108, %v946, 0
    %v958 = vsel %vm108, %v951, 0
    %960 = vmatprep.subr.mxu0 0.0
    %961 = vmatpush1.msra.mxu0 %v17
    %962 = vmatprep.subr.mxu0 0.0
    %963 = vmatpush1.msra.mxu0 %v18
    %964 = vmatprep.subr.mxu0 0.0
    %965 = vmatpush1.msra.mxu0 %v19
    %966 = vmatprep.subr.mxu0 0.0
    %967 = vmatpush1.msra.mxu0 %v20
    %968 = vmatprep.subr.mxu0 0.0
    %969 = vmatpush1.msra.mxu0 0.0
    %970 = vmatprep.subr.mxu0 0.0
    %971 = vmatpush1.msra.mxu0 0.0
    %972 = vmatprep.subr.mxu0 0.0
    %973 = vmatpush1.msra.mxu0 0.0
    %974 = vmatprep.subr.mxu0 0.0
    %975 = vmatpush1.msra.mxu0 0.0
    %976 = vmatprep.subr.mxu0 0.0
    %977 = vmatpush1.msra.mxu0 0.0
    %978 = vmatprep.subr.mxu0 0.0
    %979 = vmatpush1.msra.mxu0 0.0
    %980 = vmatprep.subr.mxu0 0.0
    %981 = vmatpush1.msra.mxu0 0.0
    %982 = vmatprep.subr.mxu0 0.0
    %983 = vmatpush1.msra.mxu0 0.0
    %984 = vmatprep.subr.mxu0 0.0
    %985 = vmatpush1.msra.mxu0 0.0
    %986 = vmatprep.subr.mxu0 0.0
    %987 = vmatpush1.msra.mxu0 0.0
    %988 = vmatprep.subr.mxu0 0.0
    %989 = vmatpush1.msra.mxu0 0.0
    %990 = vmatprep.subr.mxu0 0.0
    %991 = vmatpush1.msra.mxu0 0.0
    %992 = vmatprep.subr.mxu0 0.0
    %993 = vmatpush1.msra.mxu0 0.0
    %994 = vmatprep.subr.mxu0 0.0
    %995 = vmatpush1.msra.mxu0 0.0
    %996 = vmatprep.subr.mxu0 0.0
    %997 = vmatpush1.msra.mxu0 0.0
    %998 = vmatprep.subr.mxu0 0.0
    %999 = vmatpush1.msra.mxu0 0.0
    %1000 = vmatprep.subr.mxu0 0.0
    %1001 = vmatpush1.msra.mxu0 0.0
    %1002 = vmatprep.subr.mxu0 0.0
    %1003 = vmatpush1.msra.mxu0 0.0
    %1004 = vmatprep.subr.mxu0 0.0
    %1005 = vmatpush1.msra.mxu0 0.0
    %1006 = vmatprep.subr.mxu0 0.0
    %1007 = vmatpush1.msra.mxu0 0.0
    %1008 = vmatprep.subr.mxu0 0.0
    %1009 = vmatpush1.msra.mxu0 0.0
    %1010 = vmatprep.subr.mxu0 0.0
    %1011 = vmatpush1.msra.mxu0 0.0
    %1012 = vmatprep.subr.mxu0 0.0
    %1013 = vmatpush1.msra.mxu0 0.0
    %1014 = vmatprep.subr.mxu0 0.0
    %1015 = vmatpush1.msra.mxu0 0.0
    %1016 = vmatprep.subr.mxu0 0.0
    %1017 = vmatpush1.msra.mxu0 0.0
    %1018 = vmatprep.subr.mxu0 0.0
    %1019 = vmatpush1.msra.mxu0 0.0
    %1020 = vmatprep.subr.mxu0 0.0
    %1021 = vmatpush1.msra.mxu0 0.0
    %1022 = vmatprep.subr.mxu0 0.0
    %1023 = vmatpush1.msra.mxu0 0.0
    %1024 = vmatprep.mubr.f32.mxu0 0.0
    %1025 = vmatmul.mubr.f32.gmra.mrb[0].mxu0 %v955
    %v1026 = vpop.f32.mrb[0].mxu0
    %v1027 = vadd.f32 0.0, %v1026
    %v1028 = vpop.f32.mrb[0].mxu0
    %1029 = vmatprep.mubr.f32.mxu0 0.0
    %1030 = vmatmul.mubr.f32.gmra.mrb[0].mxu0 %v958
    %v1031 = vpop.f32.mrb[0].mxu0
    %v1032 = vadd.f32 0.0, %v1031
    %v1033 = vpop.f32.mrb[0].mxu0
    %1034 = vdwg.mxu0
    %v1035 = vmul.f32 %v1027, 0.014220065
    %v1036 = vmul.f32 %v1032, 0.014220065
    %v1037 = vadd.f32 %v1035, -1.4802197
    %v1038 = vadd.f32 %v1036, -1.4802197
    %s1039 = scalar_lea.vmem [#allocation2], 80
    %1040 = vst.msk [vmem:[%s1039] sm:$0xff] %vm194, %v1037
    %1041 = vst.msk [vmem:[%s1039 + $0x8] sm:$0xff] %vm194, %v1038
    // Predicated region
    $region14: #{_lambda_.1} parent=1 // pred_check
      _
    $region15: #{_lambda_.1} parent=1 // pred_check_branch
      %1043 = sbr.rel (0) target = $region17
    $region16: #{_lambda_.1} parent=1 // pred_region
      %s1045 = ssub.s32 1536, 1536
      %1046 = vsyncadd [#allocation3], %s1045
      %s1047 = sshll.u32 [#allocation2], 4
      %s1048 = int_to_ptr.vmem [resolvable:$true] %s1047
      %1053 = dma.vmem_to_hbm [thread:$0]  %s1048, 1536, %s3, [#allocation3], 128, 128, 8
    $region17: #{_lambda_.1} parent=1 // pred_fallthru
      _
    // Predicated region
    $region18: #{_lambda_.1} parent=1 // pred_check
      _
    $region19: #{_lambda_.1} parent=1 // pred_check_branch
      %1055 = sbr.rel (0) target = $region21
    $region20: #{_lambda_.1} parent=1 // pred_region
      %1056 = dma.done [#allocation3], 1536
    $region21: #{_lambda_.1} parent=1 // pred_fallthru
      _
    %1057 = vsyncpa [#allocation3], 1

</llo_original>
